<compile_context>
chip_gen: v7x
topology: tpu7x:2x2x1
jax: 0.10.0
libtpu: 0.0.40
codegen_flags: <defaults>
</compile_context>

<pallas_src>
import functools

import jax
import jax.numpy as jnp
from jax import lax
from jax.experimental import pallas as pl
from jax.experimental.pallas import tpu as pltpu

LANE = 128  # pad channel / output dims to the 128-lane vreg width


# ----------------------------- small helpers -----------------------------

def _pad_to(x, axis, size):
    pad = size - x.shape[axis]
    if pad <= 0:
        return x
    widths = [(0, 0)] * x.ndim
    widths[axis] = (0, pad)
    return jnp.pad(x, widths)


def _pick_divisor(n, cap):
    for t in range(min(n, cap), 0, -1):
        if n % t == 0:
            return t
    return n


def _pick_tm(m, cap, group=None):
    """Largest M-tile <= cap that divides M (and `group`), sublane friendly, and keeps
    >= 2 parallel grid steps (v7x has 2 TensorCores)."""
    limit = min(m, cap)
    if group is not None:
        limit = min(limit, group)
    if m >= 16:
        limit = min(limit, m // 2)
    for t in range(max(limit, 1), 0, -1):
        if m % t == 0 and (group is None or group % t == 0) and (t % 8 == 0 or t == m):
            return t
    return m


def _pick_tk(kdim):
    # v6e/v7x MXU is 256-deep; fall back to 128, or a single full-K block for small K.
    if kdim % 256 == 0:
        return 256
    if kdim % 128 == 0:
        return 128
    return kdim


def _cparams(dimension_semantics):
    return pltpu.CompilerParams(dimension_semantics=dimension_semantics,
                                vmem_limit_bytes=32 * 1024 * 1024)


# ----------------------------- GEMM + BN + act -----------------------------

def _gemm_kernel(x_ref, w_ref, s_ref, b_ref, o_ref, acc_ref, *, act):
    k = pl.program_id(1)

    @pl.when(k == 0)
    def _():
        acc_ref[...] = jnp.zeros_like(acc_ref)

    acc_ref[...] += jnp.dot(x_ref[...], w_ref[...], preferred_element_type=jnp.float32)

    @pl.when(k == pl.num_programs(1) - 1)
    def _():
        y = acc_ref[...] * s_ref[...] + b_ref[...]        # folded BN in f32
        if act == "silu":
            y = y * jax.nn.sigmoid(y)
        o_ref[...] = y.astype(o_ref.dtype)


def gemm_bn_act(x, w, scale, bias, act="none", out_dtype=jnp.bfloat16, max_tm=512):
    """out = act(x @ w * scale + bias)  — tiled over (M, K), f32 scratch accumulator."""
    m, kdim = x.shape
    kw, npad = w.shape
    assert kdim == kw
    tm = _pick_tm(m, max_tm)
    tk = _pick_tk(kdim)
    nk = kdim // tk
    return pl.pallas_call(
        functools.partial(_gemm_kernel, act=act),
        out_shape=jax.ShapeDtypeStruct((m, npad), out_dtype),
        grid=(m // tm, nk),
        in_specs=[
            pl.BlockSpec((tm, tk), lambda i, k: (i, k)),
            pl.BlockSpec((tk, npad), lambda i, k: (k, 0)),
            pl.BlockSpec((1, npad), lambda i, k: (0, 0)),
            pl.BlockSpec((1, npad), lambda i, k: (0, 0)),
        ],
        out_specs=pl.BlockSpec((tm, npad), lambda i, k: (i, 0)),
        scratch_shapes=[pltpu.VMEM((tm, npad), jnp.float32)],
        compiler_params=_cparams(("parallel", "arbitrary")),
    )(x.astype(jnp.bfloat16), w.astype(jnp.bfloat16),
      scale.reshape(1, npad).astype(jnp.float32),
      bias.reshape(1, npad).astype(jnp.float32))


# ---------------- depthwise 3x3 + BN + SiLU + fused GAP + fused SE gate ----------------

def _dwconv_se_kernel(x_ref, w_ref, s_ref, b_ref, w1_ref, b1_ref, w2_ref, b2_ref,
                      o_ref, g_ref, *, rpc):
    """Depthwise 3x3 (stride 1, pre-padded block) with BN+SiLU; epilogue computes the
    global-average-pool of this batch element and both SE FC layers -> sigmoid gate."""
    _, ho, wo, c = o_ref.shape
    w = w_ref[...]                    # (3, 3, C) bf16
    scale = s_ref[...]                # (1, C) f32
    bias = b_ref[...]                 # (1, C) f32
    n_chunks = ho // rpc

    def body(chunk, pooled):
        r0 = pl.multiple_of(chunk * rpc, rpc)
        acc = jnp.zeros((1, rpc, wo, c), jnp.float32)
        for i in range(3):
            for j in range(3):
                tap = x_ref[:, pl.ds(r0 + i, rpc), pl.ds(j, wo), :]      # bf16 per-tap load
                acc = acc + (tap * w[i, j, :]).astype(jnp.float32)       # bf16 mul, f32 add
        y = acc * scale + bias
        y = y * jax.nn.sigmoid(y)
        o_ref[:, pl.ds(r0, rpc), :, :] = y.astype(o_ref.dtype)
        return pooled + jnp.sum(y, axis=(1, 2))                          # (1, C)

    pooled = lax.fori_loop(0, n_chunks, body, jnp.zeros((1, c), jnp.float32), unroll=True)
    pooled = pooled * (1.0 / (ho * wo))                                   # f32 pooled vector

    # SE: FC -> SiLU -> FC -> sigmoid, all on the tiny (1, C) vector (f32 math).
    h = jnp.dot(pooled, w1_ref[...], preferred_element_type=jnp.float32) + b1_ref[...]
    h = h * jax.nn.sigmoid(h)
    g = jnp.dot(h, w2_ref[...], preferred_element_type=jnp.float32) + b2_ref[...]
    g_ref[...] = jax.nn.sigmoid(g).reshape(g_ref.shape).astype(g_ref.dtype)


def dwconv3x3_bn_silu_se(x_nhwc, w_dw, scale, bias, w1, b1, w2, b2, max_rows=8):
    n, h, w, c = x_nhwc.shape
    s = w1.shape[1]
    # TODO(synk): for real EfficientNet resolutions, tile over spatial rows with the 1-px halo
    #             handled in-kernel instead of this host-side pad; at these sizes one image
    #             per grid step fits easily in VMEM.
    xp = jnp.pad(x_nhwc, ((0, 0), (1, 1), (1, 1), (0, 0)))
    rpc = _pick_divisor(h, max_rows)
    act, gate = pl.pallas_call(
        functools.partial(_dwconv_se_kernel, rpc=rpc),
        out_shape=(jax.ShapeDtypeStruct((n, h, w, c), jnp.bfloat16),
                   jax.ShapeDtypeStruct((n, 1, c), jnp.bfloat16)),
        grid=(n,),
        in_specs=[
            pl.BlockSpec((1, h + 2, w + 2, c), lambda b: (b, 0, 0, 0)),
            pl.BlockSpec((3, 3, c), lambda b: (0, 0, 0)),
            pl.BlockSpec((1, c), lambda b: (0, 0)),
            pl.BlockSpec((1, c), lambda b: (0, 0)),
            pl.BlockSpec((c, s), lambda b: (0, 0)),
            pl.BlockSpec((1, s), lambda b: (0, 0)),
            pl.BlockSpec((s, c), lambda b: (0, 0)),
            pl.BlockSpec((1, c), lambda b: (0, 0)),
        ],
        out_specs=(pl.BlockSpec((1, h, w, c), lambda b: (b, 0, 0, 0)),
                   pl.BlockSpec((1, 1, c), lambda b: (b, 0, 0))),
        compiler_params=_cparams(("parallel",)),
    )(xp.astype(jnp.bfloat16), w_dw.astype(jnp.bfloat16),
      scale.reshape(1, c).astype(jnp.float32), bias.reshape(1, c).astype(jnp.float32),
      w1.astype(jnp.float32), b1.reshape(1, s).astype(jnp.float32),
      w2.astype(jnp.float32), b2.reshape(1, c).astype(jnp.float32))
    return act, gate.reshape(n, c)


# -------- projection GEMM (SE scale + residual fused) with head 1x1 conv fused in --------

def _proj_head_kernel(x_ref, w_ref, s_ref, b_ref, rs_ref, res_ref,
                      hw_ref, hs_ref, hb_ref, o_ref, acc_ref):
    k = pl.program_id(1)

    @pl.when(k == 0)
    def _():
        acc_ref[...] = jnp.zeros_like(acc_ref)

    a = x_ref[...] * rs_ref[0]                             # SE excite fused on the A rows
    acc_ref[...] += jnp.dot(a, w_ref[...], preferred_element_type=jnp.float32)

    @pl.when(k == pl.num_programs(1) - 1)
    def _():
        y = acc_ref[...] * s_ref[...] + b_ref[...]         # projection BN (no act)
        y = y + res_ref[...].astype(jnp.float32)           # fused residual add
        # fused head 1x1 conv + BN + SiLU on the resident (tm, C) tile
        z = jnp.dot(y.astype(jnp.bfloat16), hw_ref[...], preferred_element_type=jnp.float32)
        z = z * hs_ref[...] + hb_ref[...]
        z = z * jax.nn.sigmoid(z)
        o_ref[...] = z.astype(o_ref.dtype)


def proj_head_gemm(x, w, scale, bias, row_scale, rows_per_group, residual,
                   head_w, head_s, head_b, out_dtype=jnp.bfloat16, max_tm=512):
    m, kdim = x.shape
    _, pnpad = w.shape
    _, hnpad = head_w.shape
    tm = _pick_tm(m, max_tm, group=rows_per_group)
    tk = _pick_tk(kdim)
    nk = kdim // tk
    q = rows_per_group // tm                               # M-tiles per batch element
    rs = row_scale.astype(jnp.bfloat16).reshape(-1, 1, kdim)
    return pl.pallas_call(
        _proj_head_kernel,
        out_shape=jax.ShapeDtypeStruct((m, hnpad), out_dtype),
        grid=(m // tm, nk),
        in_specs=[
            pl.BlockSpec((tm, tk), lambda i, k: (i, k)),
            pl.BlockSpec((tk, pnpad), lambda i, k: (k, 0)),
            pl.BlockSpec((1, pnpad), lambda i, k: (0, 0)),
            pl.BlockSpec((1, pnpad), lambda i, k: (0, 0)),
            pl.BlockSpec((1, 1, tk), lambda i, k, q=q: (i // q, 0, k)),
            pl.BlockSpec((tm, pnpad), lambda i, k: (i, 0)),
            pl.BlockSpec((pnpad, hnpad), lambda i, k: (0, 0)),
            pl.BlockSpec((1, hnpad), lambda i, k: (0, 0)),
            pl.BlockSpec((1, hnpad), lambda i, k: (0, 0)),
        ],
        out_specs=pl.BlockSpec((tm, hnpad), lambda i, k: (i, 0)),
        scratch_shapes=[pltpu.VMEM((tm, pnpad), jnp.float32)],
        compiler_params=_cparams(("parallel", "arbitrary")),
    )(x.astype(jnp.bfloat16), w.astype(jnp.bfloat16),
      scale.reshape(1, pnpad).astype(jnp.float32), bias.reshape(1, pnpad).astype(jnp.float32),
      rs, residual.astype(jnp.bfloat16),
      head_w.astype(jnp.bfloat16), head_s.reshape(1, hnpad).astype(jnp.float32),
      head_b.reshape(1, hnpad).astype(jnp.float32))


# ---------------- global average pool fused with the replaced nn.Linear ----------------

def _gap_linear_kernel(x_ref, w_ref, b_ref, o_ref, acc_ref, *, inv_hw):
    r = pl.program_id(1)

    @pl.when(r == 0)
    def _():
        acc_ref[...] = jnp.zeros_like(acc_ref)

    acc_ref[...] += jnp.sum(x_ref[...].astype(jnp.float32), axis=(1, 2))

    @pl.when(r == pl.num_programs(1) - 1)
    def _():
        pooled = acc_ref[...] * inv_hw                      # (1, C) f32 (kept in f32)
        y = jnp.dot(pooled, w_ref[...], preferred_element_type=jnp.float32) + b_ref[...]
        o_ref[...] = y.reshape(o_ref.shape).astype(o_ref.dtype)


def global_avg_pool_linear(x_nhwc, w, b, max_th=8):
    n, h, wdim, c = x_nhwc.shape
    kw, npad = w.shape
    assert kw == c
    th = _pick_divisor(h, max_th)
    out = pl.pallas_call(
        functools.partial(_gap_linear_kernel, inv_hw=1.0 / (h * wdim)),
        out_shape=jax.ShapeDtypeStruct((n, 1, npad), jnp.float32),
        grid=(n, h // th),
        in_specs=[
            pl.BlockSpec((1, th, wdim, c), lambda b_, r: (b_, r, 0, 0)),
            pl.BlockSpec((c, npad), lambda b_, r: (0, 0)),
            pl.BlockSpec((1, npad), lambda b_, r: (0, 0)),
        ],
        out_specs=pl.BlockSpec((1, 1, npad), lambda b_, r: (b_, 0, 0)),
        scratch_shapes=[pltpu.VMEM((1, c), jnp.float32)],
        compiler_params=_cparams(("parallel", "arbitrary")),
    )(x_nhwc, w.astype(jnp.float32), b.reshape(1, npad).astype(jnp.float32))
    return out.reshape(n, npad)


# ----------------------------- JAX glue -----------------------------

def im2col(x_nhwc, k, stride, pad):
    # Patches are emitted directly in the input dtype (bf16) and K (=k*k*Cin) is NOT padded.
    # TODO(synk): for real resolutions, replace im2col with the 9-shifted-GEMM stem.
    n, h, w, c = x_nhwc.shape
    xp = jnp.pad(x_nhwc, ((0, 0), (pad, pad), (pad, pad), (0, 0)))
    ho = (h + 2 * pad - k) // stride + 1
    wo = (w + 2 * pad - k) // stride + 1
    cols = []
    for i in range(k):
        for j in range(k):
            cols.append(xp[:, i:i + stride * ho:stride, j:j + stride * wo:stride, :])
    patches = jnp.concatenate(cols, axis=-1)               # (N, Ho, Wo, k*k*C) — Cin fastest
    return patches.reshape(n * ho * wo, k * k * c), (n, ho, wo)


def fold_bn(gamma, beta, mean, var, eps=1e-5):
    scale = gamma / jnp.sqrt(var + eps)
    bias = beta - mean * scale
    return scale, bias


def init_params(key, c_in=3, stem_c=16, exp_c=64, head_c=32, n_class=6):
    keys = jax.random.split(key, 16)

    def nrm(k, shape, s=0.1):
        return jax.random.normal(k, shape, jnp.float32) * s

    def bn(k, c):
        ks = jax.random.split(k, 4)
        gamma = 1.0 + 0.1 * jax.random.normal(ks[0], (c,), jnp.float32)
        beta = 0.1 * jax.random.normal(ks[1], (c,), jnp.float32)
        mean = 0.1 * jax.random.normal(ks[2], (c,), jnp.float32)
        var = 1.0 + 0.1 * jnp.abs(jax.random.normal(ks[3], (c,), jnp.float32))
        return (gamma, beta, mean, var)

    se_c = exp_c // 4
    return {
        "stem_w": nrm(keys[0], (9 * c_in, stem_c)),
        "stem_bn": bn(keys[1], stem_c),
        "exp_w": nrm(keys[2], (stem_c, exp_c)),
        "exp_bn": bn(keys[3], exp_c),
        "dw_w": nrm(keys[4], (3, 3, exp_c)),
        "dw_bn": bn(keys[5], exp_c),
        "se_w1": nrm(keys[6], (exp_c, se_c)),
        "se_b1": nrm(keys[7], (se_c,)),
        "se_w2": nrm(keys[8], (se_c, exp_c)),
        "se_b2": nrm(keys[9], (exp_c,)),
        "proj_w": nrm(keys[10], (exp_c, stem_c)),
        "proj_bn": bn(keys[11], stem_c),
        "head_w": nrm(keys[12], (stem_c, head_c)),
        "head_bn": bn(keys[13], head_c),
        "cls_w": nrm(keys[14], (head_c, n_class)),
        "cls_b": nrm(keys[15], (n_class,)),
    }


def prepare_params(raw):
    """Fold BN and zero-pad channel dims to the 128-lane width (stem K is left at 27)."""
    def pad_out(w_):
        return _pad_to(w_, 1, LANE)

    def pad_w(w_):
        return _pad_to(_pad_to(w_, 0, LANE), 1, LANE)

    def pad_v(v):
        return _pad_to(v, 0, LANE)

    def pad_bn(bn_tuple):
        s, b = fold_bn(*bn_tuple)
        return pad_v(s), pad_v(b)

    p = {}
    p["stem_w"] = pad_out(raw["stem_w"])                    # (27, 128) — K not padded
    p["stem_s"], p["stem_b"] = pad_bn(raw["stem_bn"])
    p["exp_w"] = pad_w(raw["exp_w"])
    p["exp_s"], p["exp_b"] = pad_bn(raw["exp_bn"])
    p["dw_w"] = _pad_to(raw["dw_w"], 2, LANE)
    p["dw_s"], p["dw_b"] = pad_bn(raw["dw_bn"])
    p["se_w1"] = pad_w(raw["se_w1"])
    p["se_b1"] = pad_v(raw["se_b1"])
    p["se_w2"] = pad_w(raw["se_w2"])
    p["se_b2"] = pad_v(raw["se_b2"])
    p["proj_w"] = pad_w(raw["proj_w"])
    p["proj_s"], p["proj_b"] = pad_bn(raw["proj_bn"])
    p["head_w"] = pad_w(raw["head_w"])
    p["head_s"], p["head_b"] = pad_bn(raw["head_bn"])
    p["cls_w"] = pad_w(raw["cls_w"])
    p["cls_b"] = pad_v(raw["cls_b"])
    return p


def efficientnet_forward(x_nchw, p, n_class=6):
    # NCHW (PyTorch) -> NHWC (kernel layout), activations in bf16 end-to-end.
    x = jnp.transpose(x_nchw, (0, 2, 3, 1)).astype(jnp.bfloat16)

    # --- stem: conv3x3 stride2 pad1 + BN + SiLU (conv-as-GEMM, K=27 unpadded) ---
    patches, (n, ho, wo) = im2col(x, k=3, stride=2, pad=1)
    stem = gemm_bn_act(patches, p["stem_w"], p["stem_s"], p["stem_b"], act="silu")  # (M,128)

    # --- MBConv: expand -> depthwise (+GAP+SE fused) -> project+residual+head fused ---
    exp = gemm_bn_act(stem, p["exp_w"], p["exp_s"], p["exp_b"], act="silu")
    exp_nhwc = exp.reshape(n, ho, wo, -1)

    dw, se = dwconv3x3_bn_silu_se(exp_nhwc, p["dw_w"], p["dw_s"], p["dw_b"],
                                  p["se_w1"], p["se_b1"], p["se_w2"], p["se_b2"])

    dw_flat = dw.reshape(n * ho * wo, -1)
    head = proj_head_gemm(dw_flat, p["proj_w"], p["proj_s"], p["proj_b"],
                          se, ho * wo, stem,
                          p["head_w"], p["head_s"], p["head_b"])       # (M, 128) bf16
    head_nhwc = head.reshape(n, ho, wo, -1)

    # --- global average pool fused with the replaced nn.Linear classifier ---
    logits_pad = global_avg_pool_linear(head_nhwc, p["cls_w"], p["cls_b"])  # (N, 128) f32
    return logits_pad[:, :n_class]


if __name__ == "__main__":
    key = jax.random.PRNGKey(0)
    k_x, k_p = jax.random.split(key)
    x = jax.random.normal(k_x, (2, 3, 16, 16), jnp.float32)             # NCHW like PyTorch
    raw = init_params(k_p, c_in=3, stem_c=16, exp_c=64, head_c=32, n_class=6)
    params = prepare_params(raw)

    logits = efficientnet_forward(x, params, n_class=6)
    jax.block_until_ready(logits)
    assert logits.shape == (2, 6), logits.shape
    assert bool(jnp.all(jnp.isfinite(logits)))
    print("KERNEL_OK")
</pallas_src>

<mosaic_0001>
module attributes {stable_mosaic.version = 11 : i64} {
  func.func @_gemm_kernel(%arg0: i32, %arg1: i32, %arg2: memref<64x27xbf16, #tpu.memory_space<vmem>>, %arg3: memref<27x128xbf16, #tpu.memory_space<vmem>>, %arg4: memref<1x128xf32, #tpu.memory_space<vmem>>, %arg5: memref<1x128xf32, #tpu.memory_space<vmem>>, %arg6: memref<64x128xbf16, #tpu.memory_space<vmem>>, %arg7: memref<64x128xf32, #tpu.memory_space<vmem>>) attributes {dimension_semantics = [#tpu.dimension_semantics<parallel>, #tpu.dimension_semantics<arbitrary>], iteration_bounds = array<i64: 2, 1>, scalar_prefetch = 0 : i64, scratch_operands = 1 : i64, tpu.core_type = #tpu.core_type<tc>, window_params = [{transform_indices = @transform_0, window_bounds = array<i64: 64, 27>}, {transform_indices = @transform_1, window_bounds = array<i64: 27, 128>}, {pipeline_mode = #tpu.pipeline_mode<synchronous>, transform_indices = @transform_2, window_bounds = array<i64: 1, 128>}, {pipeline_mode = #tpu.pipeline_mode<synchronous>, transform_indices = @transform_3, window_bounds = array<i64: 1, 128>}, {transform_indices = @transform_4, window_bounds = array<i64: 64, 128>}]} {
    %c0_i32 = arith.constant 0 : i32
    %0 = arith.cmpi eq, %arg1, %c0_i32 : i32
    %1 = arith.extui %0 : i1 to i32
    %c0_i32_0 = arith.constant 0 : i32
    %2 = arith.cmpi ne, %1, %c0_i32_0 : i32
    scf.if %2 {
      %cst_10 = arith.constant 0.000000e+00 : f32
      %12 = vector.broadcast %cst_10 : f32 to vector<64x128xf32>
      %c0_11 = arith.constant 0 : index
      %c0_12 = arith.constant 0 : index
      %13 = vector.load %arg7[%c0_11, %c0_12] : memref<64x128xf32, #tpu.memory_space<vmem>>, vector<64x128xf32>
      tpu.vector_store %arg7[%c0_11, %c0_12], %12 {strides = array<i32>} : memref<64x128xf32, #tpu.memory_space<vmem>>, vector<64x128xf32>,
    } else {
    }
    %c0 = arith.constant 0 : index
    %c0_1 = arith.constant 0 : index
    %3 = vector.load %arg7[%c0, %c0_1] : memref<64x128xf32, #tpu.memory_space<vmem>>, vector<64x128xf32>
    %c0_2 = arith.constant 0 : index
    %c0_3 = arith.constant 0 : index
    %4 = vector.load %arg2[%c0_2, %c0_3] : memref<64x27xbf16, #tpu.memory_space<vmem>>, vector<64x27xbf16>
    %c0_4 = arith.constant 0 : index
    %c0_5 = arith.constant 0 : index
    %5 = vector.load %arg3[%c0_4, %c0_5] : memref<27x128xbf16, #tpu.memory_space<vmem>>, vector<27x128xbf16>
    %cst = arith.constant dense<0.000000e+00> : vector<64x128xf32>
    %6 = tpu.matmul %4, %5, %cst {dimension_numbers = #tpu.dot_dimension_numbers<[1], [0], [0], [1], [0, 0, 1, 1], [], []>} : vector<64x27xbf16>, vector<27x128xbf16>, vector<64x128xf32> -> vector<64x128xf32>
    %7 = arith.addf %3, %6 : vector<64x128xf32>
    %c0_6 = arith.constant 0 : index
    %c0_7 = arith.constant 0 : index
    %8 = vector.load %arg7[%c0_6, %c0_7] : memref<64x128xf32, #tpu.memory_space<vmem>>, vector<64x128xf32>
    tpu.vector_store %arg7[%c0_6, %c0_7], %7 {strides = array<i32>} : memref<64x128xf32, #tpu.memory_space<vmem>>, vector<64x128xf32>,
    %c0_i32_8 = arith.constant 0 : i32
    %9 = arith.cmpi eq, %arg1, %c0_i32_8 : i32
    %10 = arith.extui %9 : i1 to i32
    %c0_i32_9 = arith.constant 0 : i32
    %11 = arith.cmpi ne, %10, %c0_i32_9 : i32
    scf.if %11 {
      %c0_10 = arith.constant 0 : index
      %c0_11 = arith.constant 0 : index
      %12 = vector.load %arg7[%c0_10, %c0_11] : memref<64x128xf32, #tpu.memory_space<vmem>>, vector<64x128xf32>
      %c0_12 = arith.constant 0 : index
      %c0_13 = arith.constant 0 : index
      %13 = vector.load %arg4[%c0_12, %c0_13] : memref<1x128xf32, #tpu.memory_space<vmem>>, vector<1x128xf32>
      %14 = vector.broadcast %13 : vector<1x128xf32> to vector<64x128xf32>
      %15 = arith.mulf %12, %14 : vector<64x128xf32>
      %c0_14 = arith.constant 0 : index
      %c0_15 = arith.constant 0 : index
      %16 = vector.load %arg5[%c0_14, %c0_15] : memref<1x128xf32, #tpu.memory_space<vmem>>, vector<1x128xf32>
      %17 = vector.broadcast %16 : vector<1x128xf32> to vector<64x128xf32>
      %18 = arith.addf %15, %17 : vector<64x128xf32>
      %19 = arith.negf %18 : vector<64x128xf32>
      %20 = math.exp %19 : vector<64x128xf32>
      %cst_16 = arith.constant 1.000000e+00 : f32
      %21 = vector.broadcast %cst_16 : f32 to vector<64x128xf32>
      %22 = arith.addf %21, %20 : vector<64x128xf32>
      %23 = arith.divf %21, %22 : vector<64x128xf32>
      %24 = arith.mulf %18, %23 : vector<64x128xf32>
      %25 = arith.truncf %24 : vector<64x128xf32> to vector<64x128xbf16>
      %c0_17 = arith.constant 0 : index
      %c0_18 = arith.constant 0 : index
      %26 = vector.load %arg6[%c0_17, %c0_18] : memref<64x128xbf16, #tpu.memory_space<vmem>>, vector<64x128xbf16>
      tpu.vector_store %arg6[%c0_17, %c0_18], %25 {strides = array<i32>} : memref<64x128xbf16, #tpu.memory_space<vmem>>, vector<64x128xbf16>,
    } else {
    }
    return
  }
  func.func @transform_0(%arg0: i32, %arg1: i32) -> (i32, i32) {
    %c0_i32 = arith.constant 0 : i32
    return %arg0, %arg1 : i32, i32
  }
  func.func @transform_1(%arg0: i32, %arg1: i32) -> (i32, i32) {
    %c0_i32 = arith.constant 0 : i32
    %c0_i32_0 = arith.constant 0 : i32
    return %arg1, %c0_i32 : i32, i32
  }
  func.func @transform_2(%arg0: i32, %arg1: i32) -> (i32, i32) {
    %c0_i32 = arith.constant 0 : i32
    %c0_i32_0 = arith.constant 0 : i32
    %c0_i32_1 = arith.constant 0 : i32
    return %c0_i32, %c0_i32_0 : i32, i32
  }
  func.func @transform_3(%arg0: i32, %arg1: i32) -> (i32, i32) {
    %c0_i32 = arith.constant 0 : i32
    %c0_i32_0 = arith.constant 0 : i32
    %c0_i32_1 = arith.constant 0 : i32
    return %c0_i32, %c0_i32_0 : i32, i32
  }
  func.func @transform_4(%arg0: i32, %arg1: i32) -> (i32, i32) {
    %c0_i32 = arith.constant 0 : i32
    %c0_i32_0 = arith.constant 0 : i32
    return %arg0, %c0_i32 : i32, i32
  }
}

</mosaic_0001>

<llo_original>
// kernel: tpu_custom_call.1
$region0: #{tpu_custom_call.1}
  #allocation0 [shape = 'u32[]', space=smem, size = 0x4, offset = 0x4, fixed_abs, tag = 'smem constant byte address 0x4 - core index']
  #allocation1 [shape = 'u32[144,128]{1,0:T(1,128)}', space=vmem, size = 0x12000, scoped, tag = 'internal scratch']
  #allocation2 [shape = 'f32[64,128]{1,0:T(8,128)}', space=vmem, size = 0x8000, scoped, tag = 'scratch operand']
  %s0 = inlined_call_operand.vmem [shape: bf16[128,27], index: 0, kind: input, shape index: {}]
  %s1 = inlined_call_operand.vmem [shape: bf16[27,128], index: 1, kind: input, shape index: {}]
  %s2 = inlined_call_operand.vmem [shape: f32[1,128], index: 2, kind: input, shape index: {}]
  %s3 = inlined_call_operand.vmem [shape: f32[1,128], index: 3, kind: input, shape index: {}]
  %s4 = inlined_call_operand.hbm [shape: bf16[128,128], index: 4, kind: output, shape index: {}]
  %s5 = sld [smem:[#allocation0]]
  $region57: #{tpu_custom_call.1} parent=0
    _
  %s7 = ssub.s32 1, %s5
  %s8 = scalar_select 0, %s7, %s5
  $region1: #{tpu_custom_call.1} parent=0
    #allocation3 [shape = 'u8[32768]{0}', space=vmem, size = 0x8000, scoped, tag = 'output window, operand 0']
    #allocation4 [shape = 's32[2]{0}', space=sflag, size = 0x8, scoped, tag = 'scoped memory for tpu_custom_call.1']
    %9 = vsyncpa [#allocation4], 0
    %s10 = scalar_lea.sflag [#allocation4], 1
    %11 = vsyncpa %s10, 0
    loop: start=0, step=1, limit=4
    $region2: #{tpu_custom_call.1} parent=1 // loop_pre_header
      _
    $region3: #{tpu_custom_call.1} parent=1 // loop_header
      %s13 = sphi 0, %s17
      %p14 = scmp.ge.s32.totalorder %s13, 4
      %s20 = sphi 0, %s32
      %s21 = sphi 0, %s28
      %s22 = sphi 0, %s20
      %s23 = sphi 0, %s21
      %s24 = sphi 0, %s22
      %s25 = sphi 0, %s23
      %s37 = sphi 0, %s39
      %s40 = sphi 0, %s37
      %s41 = sphi 0, %s40
      %s57 = sphi 0, %s41
      %s63 = sphi 0, %s65
      %s66 = sphi 0, %s63
      %s67 = sphi 0, %s66
      %s83 = sphi 0, %s67
      %s87 = sphi 0, %s87
      %s89 = sphi 0, %s87
      %s90 = sphi 0, %s89
      %s104 = sphi 0, %s90
      %s108 = sphi 0, %s108
      %s110 = sphi 0, %s108
      %s111 = sphi 0, %s110
      %s125 = sphi 0, %s111
      %s131 = sphi 0, %s133
      %s134 = sphi 0, %s131
      %s135 = sphi 0, %s134
      %s151 = sphi 0, %s135
    $region4: #{tpu_custom_call.1} parent=1 // loop_header_branch
      %16 = sbr.rel (%p14) target = $region8
    $region5: #{tpu_custom_call.1} parent=1 // loop_body
      %s18 = ssub.s32 %s13, 1
      %s19 = ssub.s32 %s13, 2
      %s26 = sadd.s32 1, %s21
      %p27 = scmp.ge.s32.totalorder %s26, 1
      %s28 = scalar_select %p27, 0, %s26
      %s29 = sadd.s32 1, %s20
      %s30 = scalar_select %p27, %s29, %s20
      %p31 = scmp.ge.s32.totalorder %s30, 2
      %s32 = scalar_select %p31, 0, %s30
      %s33 = ssub.s32 %s20, %s32
      %s34 = ssub.s32 %s21, %s28
      %s35 = sor.u32 %s33, %s34
      %p36 = scmp.eq.s32.totalorder %s35, 0
      %s38 = sadd.s32 %s37, 1
      %s39 = scalar_select %p36, %s37, %s38
      %p42 = pneg %p36
      %p43 = scmp.eq.s32.totalorder %s13, 1
      %p44 = por %p42, %p43
      %p45 = scmp.ne.s32.totalorder %s37, %s40
      %p46 = scmp.eq.s32.totalorder %s13, 0
      %p47 = por %p45, %p46
      %p48 = scmp.ne.s32.totalorder %s37, %s40
      %p49 = scmp.eq.s32.totalorder %s18, 1
      %p50 = por %p48, %p49
      %p51 = scmp.ne.s32.totalorder %s40, %s41
      %p52 = scmp.eq.s32.totalorder %s18, 0
      %p53 = por %p51, %p52
      %p54 = scmp.ne.s32.totalorder %s40, %s41
      %p55 = scmp.eq.s32.totalorder %s19, 1
      %p56 = por %p54, %p55
      %p58 = scmp.ne.s32.totalorder %s41, %s57
      %p59 = scmp.eq.s32.totalorder %s19, 0
      %p60 = por %p58, %p59
      %s61 = ssub.s32 %s21, %s28
      %p62 = scmp.eq.s32.totalorder %s61, 0
      %s64 = sadd.s32 %s63, 1
      %s65 = scalar_select %p62, %s63, %s64
      %p68 = pneg %p62
      %p69 = scmp.eq.s32.totalorder %s13, 1
      %p70 = por %p68, %p69
      %p71 = scmp.ne.s32.totalorder %s63, %s66
      %p72 = scmp.eq.s32.totalorder %s13, 0
      %p73 = por %p71, %p72
      %p74 = scmp.ne.s32.totalorder %s63, %s66
      %p75 = scmp.eq.s32.totalorder %s18, 1
      %p76 = por %p74, %p75
      %p77 = scmp.ne.s32.totalorder %s66, %s67
      %p78 = scmp.eq.s32.totalorder %s18, 0
      %p79 = por %p77, %p78
      %p80 = scmp.ne.s32.totalorder %s66, %s67
      %p81 = scmp.eq.s32.totalorder %s19, 1
      %p82 = por %p80, %p81
      %p84 = scmp.ne.s32.totalorder %s67, %s83
      %p85 = scmp.eq.s32.totalorder %s19, 0
      %p86 = por %p84, %p85
      %s88 = sadd.s32 %s87, 1
      %p91 = scmp.eq.s32.totalorder %s13, 1
      %p92 = scmp.ne.s32.totalorder %s87, %s89
      %p93 = scmp.eq.s32.totalorder %s13, 0
      %p94 = por %p92, %p93
      %p95 = scmp.ne.s32.totalorder %s87, %s89
      %p96 = scmp.eq.s32.totalorder %s18, 1
      %p97 = por %p95, %p96
      %p98 = scmp.ne.s32.totalorder %s89, %s90
      %p99 = scmp.eq.s32.totalorder %s18, 0
      %p100 = por %p98, %p99
      %p101 = scmp.ne.s32.totalorder %s89, %s90
      %p102 = scmp.eq.s32.totalorder %s19, 1
      %p103 = por %p101, %p102
      %p105 = scmp.ne.s32.totalorder %s90, %s104
      %p106 = scmp.eq.s32.totalorder %s19, 0
      %p107 = por %p105, %p106
      %s109 = sadd.s32 %s108, 1
      %p112 = scmp.eq.s32.totalorder %s13, 1
      %p113 = scmp.ne.s32.totalorder %s108, %s110
      %p114 = scmp.eq.s32.totalorder %s13, 0
      %p115 = por %p113, %p114
      %p116 = scmp.ne.s32.totalorder %s108, %s110
      %p117 = scmp.eq.s32.totalorder %s18, 1
      %p118 = por %p116, %p117
      %p119 = scmp.ne.s32.totalorder %s110, %s111
      %p120 = scmp.eq.s32.totalorder %s18, 0
      %p121 = por %p119, %p120
      %p122 = scmp.ne.s32.totalorder %s110, %s111
      %p123 = scmp.eq.s32.totalorder %s19, 1
      %p124 = por %p122, %p123
      %p126 = scmp.ne.s32.totalorder %s111, %s125
      %p127 = scmp.eq.s32.totalorder %s19, 0
      %p128 = por %p126, %p127
      %s129 = ssub.s32 %s20, %s32
      %p130 = scmp.eq.s32.totalorder %s129, 0
      %s132 = sadd.s32 %s131, 1
      %s133 = scalar_select %p130, %s131, %s132
      %p136 = pneg %p130
      %p137 = scmp.eq.s32.totalorder %s13, 1
      %p138 = por %p136, %p137
      %p139 = scmp.ne.s32.totalorder %s131, %s134
      %p140 = scmp.eq.s32.totalorder %s13, 0
      %p141 = por %p139, %p140
      %p142 = scmp.ne.s32.totalorder %s131, %s134
      %p143 = scmp.eq.s32.totalorder %s18, 1
      %p144 = por %p142, %p143
      %p145 = scmp.ne.s32.totalorder %s134, %s135
      %p146 = scmp.eq.s32.totalorder %s18, 0
      %p147 = por %p145, %p146
      %p148 = scmp.ne.s32.totalorder %s134, %s135
      %p149 = scmp.eq.s32.totalorder %s19, 1
      %p150 = por %p148, %p149
      %p152 = scmp.ne.s32.totalorder %s135, %s151
      %p153 = scmp.eq.s32.totalorder %s19, 0
      %p154 = por %p152, %p153
      %p155 = scmp.le.s32.totalorder 1, %s13
      %p156 = scmp.lt.s32.totalorder %s13, 3
      %p157 = pnand %p155, %p156
      %p158 = pneg %p157
      // Predicated region
      $region9: #{tpu_custom_call.1} parent=5 // pred_check
        _
      $region10: #{tpu_custom_call.1} parent=5 // pred_check_branch
        %160 = sbr.rel (%p157) target = $region12
      $region11: #{tpu_custom_call.1} parent=5 // pred_region
        %s161 = ssub.s32 %s13, 1
        // Predicated region
        $region13: #{tpu_custom_call.1} parent=11 // pred_check
          %p162 = pneg %p79
        $region14: #{tpu_custom_call.1} parent=11 // pred_check_branch
          %164 = sbr.rel (%p162) target = $region16
        $region15: #{tpu_custom_call.1} parent=11 // pred_region
          %s165 = smul.u32 4, %s23
          %p166 = scmp.lt.s32.totalorder %s165, 3
          %s167 = scalar_select %p166, %s165, 3
          %s168 = smul.addr %s167, 4
          %s169 = scalar_lea.vmem %s1, %s168
          %s170 = smul.u32 4, %s23
        $region16: #{tpu_custom_call.1} parent=11 // pred_fallthru
          _
        // Predicated region
        $region17: #{tpu_custom_call.1} parent=11 // pred_check
          %p171 = pneg %p100
        $region18: #{tpu_custom_call.1} parent=11 // pred_check_branch
          %173 = sbr.rel (%p171) target = $region20
        $region19: #{tpu_custom_call.1} parent=11 // pred_region
          _
        $region20: #{tpu_custom_call.1} parent=11 // pred_fallthru
          _
        // Predicated region
        $region21: #{tpu_custom_call.1} parent=11 // pred_check
          %p174 = pneg %p121
        $region22: #{tpu_custom_call.1} parent=11 // pred_check_branch
          %176 = sbr.rel (%p174) target = $region24
        $region23: #{tpu_custom_call.1} parent=11 // pred_region
          _
        $region24: #{tpu_custom_call.1} parent=11 // pred_fallthru
          _
      $region12: #{tpu_custom_call.1} parent=5 // pred_fallthru
        _
      %p177 = scmp.lt.s32.totalorder %s13, 2
      // Predicated region
      $region25: #{tpu_custom_call.1} parent=5 // pred_check
        %p178 = pneg %p177
      $region26: #{tpu_custom_call.1} parent=5 // pred_check_branch
        %180 = sbr.rel (%p178) target = $region28
      $region27: #{tpu_custom_call.1} parent=5 // pred_region
        // Predicated region
        $region29: #{tpu_custom_call.1} parent=27 // pred_check
          %p181 = pneg %p47
        $region30: #{tpu_custom_call.1} parent=27 // pred_check_branch
          %183 = sbr.rel (%p181) target = $region32
        $region31: #{tpu_custom_call.1} parent=27 // pred_region
          %s184 = smul.u32 8, %s20
          %p185 = scmp.lt.s32.totalorder %s184, 15
          %s186 = scalar_select %p185, %s184, 15
          %p187 = scmp.lt.s32.totalorder %s21, 0
          %s188 = scalar_select %p187, %s21, 0
          %s189 = sadd.s32 %s188, %s186
          %s190 = smul.addr %s189, 4
          %s191 = scalar_lea.vmem %s0, %s190
          %s192 = smul.u32 8, %s20
        $region32: #{tpu_custom_call.1} parent=27 // pred_fallthru
          _
      $region28: #{tpu_custom_call.1} parent=5 // pred_fallthru
        _
      %p193 = scmp.le.s32.totalorder 1, %s13
      %p194 = scmp.lt.s32.totalorder %s13, 3
      %p195 = pnand %p193, %p194
      %p196 = pneg %p195
      // Predicated region
      $region33: #{tpu_custom_call.1} parent=5 // pred_check
        _
      $region34: #{tpu_custom_call.1} parent=5 // pred_check_branch
        %198 = sbr.rel (%p195) target = $region36
      $region35: #{tpu_custom_call.1} parent=5 // pred_region
        %s199 = ssub.s32 %s13, 1
        %s200 = smul.u32 8, %s22
        %p201 = scmp.lt.s32.totalorder %s200, 15
        %s202 = scalar_select %p201, %s200, 15
        %p203 = scmp.lt.s32.totalorder %s23, 0
        %s204 = scalar_select %p203, %s23, 0
        %s205 = sadd.s32 %s204, %s202
        %s206 = smul.addr %s205, 4
        %s207 = scalar_lea.vmem %s0, %s206
        %p208 = pneg %p53
        %p209 = pneg %p50
        %s210 = smul.u32 4, %s23
        %p211 = scmp.lt.s32.totalorder %s210, 3
        %s212 = scalar_select %p211, %s210, 3
        %s213 = smul.addr %s212, 4
        %s214 = scalar_lea.vmem %s1, %s213
        %p215 = pneg %p79
        %p216 = pneg %p76
        %p217 = pneg %p100
        %p218 = pneg %p97
        %p219 = pneg %p121
        %p220 = pneg %p118
        %p221 = pneg %p147
        %p222 = pneg %p144
        %s223 = sand.u32 %s134, 1
        %s224 = scalar_lea.sflag [#allocation4], %s223
        %s225 = sand.u32 %s134, 1
        %s226 = smul.addr %s225, 32
        %s227 = scalar_lea.vmem [#allocation3], %s226
        %s228 = smul.u32 8, %s22
        %p229 = scmp.lt.s32.totalorder %s228, 15
        %s230 = scalar_select %p229, %s228, 15
        %p231 = scmp.lt.s32.totalorder %s23, 0
        %s232 = scalar_select %p231, %s23, 0
        %s233 = sadd.s32 %s232, %s230
        %s234 = smul.addr %s233, 4
        %s235 = scalar_lea.vmem %s0, %s234
        %s236 = smul.u32 8, %s22
        %s237 = smul.u32 4, %s23
        %p238 = scmp.lt.s32.totalorder %s237, 3
        %s239 = scalar_select %p238, %s237, 3
        %s240 = smul.addr %s239, 4
        %s241 = scalar_lea.vmem %s1, %s240
        %s242 = smul.u32 4, %s23
        %s243 = smul.u32 8, %s22
        %p245 = scmp.eq.s32.totalorder %s23, 0
        // Predicated region
        $region37: #{tpu_custom_call.1} parent=35 // pred_check
          %p246 = pneg %p245
        $region38: #{tpu_custom_call.1} parent=35 // pred_check_branch
          %248 = sbr.rel (%p246) target = $region40
        $region39: #{tpu_custom_call.1} parent=35 // pred_region
          %249 = vst [vmem:[#allocation2] sm:$0xff] 0.0
          %250 = vst [vmem:[#allocation2 + $0x8] sm:$0xff] 0.0
          %251 = vst [vmem:[#allocation2 + $0x10] sm:$0xff] 0.0
          %252 = vst [vmem:[#allocation2 + $0x18] sm:$0xff] 0.0
          %253 = vst [vmem:[#allocation2 + $0x20] sm:$0xff] 0.0
          %254 = vst [vmem:[#allocation2 + $0x28] sm:$0xff] 0.0
          %255 = vst [vmem:[#allocation2 + $0x30] sm:$0xff] 0.0
          %256 = vst [vmem:[#allocation2 + $0x38] sm:$0xff] 0.0
        $region40: #{tpu_custom_call.1} parent=35 // pred_fallthru
          _
        %v257 = vld [vmem:[#allocation2] sm:$0xff]
        %v258 = vld [vmem:[#allocation2 + $0x8] sm:$0xff]
        %v259 = vld [vmem:[#allocation2 + $0x10] sm:$0xff]
        %v260 = vld [vmem:[#allocation2 + $0x18] sm:$0xff]
        %v261 = vld [vmem:[#allocation2 + $0x20] sm:$0xff]
        %v262 = vld [vmem:[#allocation2 + $0x28] sm:$0xff]
        %v263 = vld [vmem:[#allocation2 + $0x30] sm:$0xff]
        %v264 = vld [vmem:[#allocation2 + $0x38] sm:$0xff]
        %v265 = vld [vmem:[%s235] sm:$0xf]
        %v266 = vld [vmem:[%s235 + $0x4] sm:$0xf]
        %v267 = vld [vmem:[%s235 + $0x8] sm:$0xf]
        %v268 = vld [vmem:[%s235 + $0xc] sm:$0xf]
        %v269 = vld [vmem:[%s235 + $0x10] sm:$0xf]
        %v270 = vld [vmem:[%s235 + $0x14] sm:$0xf]
        %v271 = vld [vmem:[%s235 + $0x18] sm:$0xf]
        %v272 = vld [vmem:[%s235 + $0x1c] sm:$0xf]
        %v273 = vld [vmem:[%s241] sm:$0xf]
        %v274 = vld [vmem:[%s241 + $0x4] sm:$0xf]
        %v275 = vld [vmem:[%s241 + $0x8] sm:$0xf]
        %v276 = vld [vmem:[%s241 + $0xc] sm:$0x3]
        %v285 = vunpack.c.l.b16 %v265
        %v286 = vunpack.c.l.b16 %v266
        %v287 = vunpack.c.l.b16 %v267
        %v288 = vunpack.c.l.b16 %v268
        %v289 = vunpack.c.l.b16 %v269
        %v290 = vunpack.c.l.b16 %v270
        %v291 = vunpack.c.l.b16 %v271
        %v292 = vunpack.c.l.b16 %v272
        %v293 = vpack.c.b16 %v286, %v285
        %v294 = vpack.c.b16 %v288, %v287
        %v295 = vpack.c.b16 %v290, %v289
        %v296 = vpack.c.b16 %v292, %v291
        %v301 = vunpack.c.l.b16 %v273
        %v302 = vunpack.c.l.b16 %v274
        %v303 = vunpack.c.l.b16 %v275
        %v304 = vunpack.c.l.b16 %v276
        %v305 = vpack.c.b16 %v302, %v301
        %v306 = vpack.c.b16 %v304, %v303
        %vm308 = vcmask 220160
        %v310 = vsel %vm308, %v293, 0
        %v313 = vsel %vm308, %v294, 0
        %v316 = vsel %vm308, %v295, 0
        %v319 = vsel %vm308, %v296, 0
        %vm321 = vcmask 1044480
        %vm322 = vcmask 1045504
        %v323 = vsel %vm321, 4294967295, 65535
        %v324 = vsel %vm322, %v323, 0
        %v326 = vand.u32 %v306, %v324
        %328 = vmatprep.subr.bf16.mxu0 0
        %329 = vmatpush1.bf16.msra.mxu0 %v305
        %330 = vmatprep.subr.bf16.mxu0 0
        %331 = vmatpush1.bf16.msra.mxu0 %v326
        %332 = vmatprep.subr.bf16.mxu0 0
        %333 = vmatpush1.bf16.msra.mxu0 0
        %334 = vmatprep.subr.bf16.mxu0 0
        %335 = vmatpush1.bf16.msra.mxu0 0
        %336 = vmatprep.subr.bf16.mxu0 0
        %337 = vmatpush1.bf16.msra.mxu0 0
        %338 = vmatprep.subr.bf16.mxu0 0
        %339 = vmatpush1.bf16.msra.mxu0 0
        %340 = vmatprep.subr.bf16.mxu0 0
        %341 = vmatpush1.bf16.msra.mxu0 0
        %342 = vmatprep.subr.bf16.mxu0 0
        %343 = vmatpush1.bf16.msra.mxu0 0
        %344 = vmatprep.subr.bf16.mxu0 0
        %345 = vmatpush1.bf16.msra.mxu0 0
        %346 = vmatprep.subr.bf16.mxu0 0
        %347 = vmatpush1.bf16.msra.mxu0 0
        %348 = vmatprep.subr.bf16.mxu0 0
        %349 = vmatpush1.bf16.msra.mxu0 0
        %350 = vmatprep.subr.bf16.mxu0 0
        %351 = vmatpush1.bf16.msra.mxu0 0
        %352 = vmatprep.subr.bf16.mxu0 0
        %353 = vmatpush1.bf16.msra.mxu0 0
        %354 = vmatprep.subr.bf16.mxu0 0
        %355 = vmatpush1.bf16.msra.mxu0 0
        %356 = vmatprep.subr.bf16.mxu0 0
        %357 = vmatpush1.bf16.msra.mxu0 0
        %358 = vmatprep.subr.bf16.mxu0 0
        %359 = vmatpush1.bf16.msra.mxu0 0
        %360 = vmatprep.mubr.bf16.mxu0 0
        %361 = vmatmul.mubr.bf16.gmra.mrb[0].mxu0 %v310
        %v362 = vpop.f32.mrb[0].mxu0
        %v363 = vadd.f32 0.0, %v362
        %v364 = vpop.f32.mrb[0].mxu0
        %v365 = vpop.f32.mrb[0].mxu0
        %v366 = vadd.f32 0.0, %v365
        %v367 = vpop.f32.mrb[0].mxu0
        %368 = vmatprep.mubr.bf16.mxu0 0
        %369 = vmatmul.mubr.bf16.gmra.mrb[0].mxu0 %v313
        %v370 = vpop.f32.mrb[0].mxu0
        %v371 = vadd.f32 0.0, %v370
        %v372 = vpop.f32.mrb[0].mxu0
        %v373 = vpop.f32.mrb[0].mxu0
        %v374 = vadd.f32 0.0, %v373
        %v375 = vpop.f32.mrb[0].mxu0
        %376 = vmatprep.mubr.bf16.mxu0 0
        %377 = vmatmul.mubr.bf16.gmra.mrb[0].mxu0 %v316
        %v378 = vpop.f32.mrb[0].mxu0
        %v379 = vadd.f32 0.0, %v378
        %v380 = vpop.f32.mrb[0].mxu0
        %v381 = vpop.f32.mrb[0].mxu0
        %v382 = vadd.f32 0.0, %v381
        %v383 = vpop.f32.mrb[0].mxu0
        %384 = vmatprep.mubr.bf16.mxu0 0
        %385 = vmatmul.mubr.bf16.gmra.mrb[0].mxu0 %v319
        %v386 = vpop.f32.mrb[0].mxu0
        %v387 = vadd.f32 0.0, %v386
        %v388 = vpop.f32.mrb[0].mxu0
        %v389 = vpop.f32.mrb[0].mxu0
        %v390 = vadd.f32 0.0, %v389
        %v391 = vpop.f32.mrb[0].mxu0
        %392 = vdwg.mxu0
        %v393 = vadd.f32 %v257, %v363
        %v394 = vadd.f32 %v258, %v366
        %v395 = vadd.f32 %v259, %v371
        %v396 = vadd.f32 %v260, %v374
        %v397 = vadd.f32 %v261, %v379
        %v398 = vadd.f32 %v262, %v382
        %v399 = vadd.f32 %v263, %v387
        %v400 = vadd.f32 %v264, %v390
        %401 = vst [vmem:[#allocation2] sm:$0xff] %v393
        %402 = vst [vmem:[#allocation2 + $0x8] sm:$0xff] %v394
        %403 = vst [vmem:[#allocation2 + $0x10] sm:$0xff] %v395
        %404 = vst [vmem:[#allocation2 + $0x18] sm:$0xff] %v396
        %405 = vst [vmem:[#allocation2 + $0x20] sm:$0xff] %v397
        %406 = vst [vmem:[#allocation2 + $0x28] sm:$0xff] %v398
        %407 = vst [vmem:[#allocation2 + $0x30] sm:$0xff] %v399
        %408 = vst [vmem:[#allocation2 + $0x38] sm:$0xff] %v400
        // Predicated region
        $region41: #{tpu_custom_call.1} parent=35 // pred_check
          %p409 = pneg %p245
        $region42: #{tpu_custom_call.1} parent=35 // pred_check_branch
          %411 = sbr.rel (%p409) target = $region44
        $region43: #{tpu_custom_call.1} parent=35 // pred_region
          %v412 = vld [vmem:[#allocation2] sm:$0xff]
          %v413 = vld [vmem:[#allocation2 + $0x8] sm:$0xff]
          %v414 = vld [vmem:[#allocation2 + $0x10] sm:$0xff]
          %v415 = vld [vmem:[#allocation2 + $0x18] sm:$0xff]
          %v416 = vld [vmem:[#allocation2 + $0x20] sm:$0xff]
          %v417 = vld [vmem:[#allocation2 + $0x28] sm:$0xff]
          %v418 = vld [vmem:[#allocation2 + $0x30] sm:$0xff]
          %v419 = vld [vmem:[#allocation2 + $0x38] sm:$0xff]
          %v420 = vld [vmem:[%s2] sm:$0x1]
          %v422 = vlaneseq
          %v423 = vshrl.u32 %v422, 7
          %v424 = vsub.s32 0, %v423
          %v425 = vrot.slane %v420, %v424
          %v427 = vmul.f32 %v412, %v425
          %v428 = vmul.f32 %v413, %v425
          %v429 = vmul.f32 %v414, %v425
          %v430 = vmul.f32 %v415, %v425
          %v431 = vmul.f32 %v416, %v425
          %v432 = vmul.f32 %v417, %v425
          %v433 = vmul.f32 %v418, %v425
          %v434 = vmul.f32 %v419, %v425
          %v435 = vld [vmem:[%s3] sm:$0x1]
          %v437 = vlaneseq
          %v438 = vshrl.u32 %v437, 7
          %v439 = vsub.s32 0, %v438
          %v440 = vrot.slane %v435, %v439
          %v442 = vadd.f32 %v427, %v440
          %v443 = vadd.f32 %v428, %v440
          %v444 = vadd.f32 %v429, %v440
          %v445 = vadd.f32 %v430, %v440
          %v446 = vadd.f32 %v431, %v440
          %v447 = vadd.f32 %v432, %v440
          %v448 = vadd.f32 %v433, %v440
          %v449 = vadd.f32 %v434, %v440
          %v450 = vxor.u32 %v442, 2147483648
          %v451 = vxor.u32 %v443, 2147483648
          %v452 = vxor.u32 %v444, 2147483648
          %v453 = vxor.u32 %v445, 2147483648
          %v454 = vxor.u32 %v446, 2147483648
          %v455 = vxor.u32 %v447, 2147483648
          %v456 = vxor.u32 %v448, 2147483648
          %v457 = vxor.u32 %v449, 2147483648
          %v458 = vmul.f32 %v450, 1.442695
          %v459 = vpow.pop %v458
          %v460 = vmul.f32 %v451, 1.442695
          %v461 = vpow.pop %v460
          %v462 = vmul.f32 %v452, 1.442695
          %v463 = vpow.pop %v462
          %v464 = vmul.f32 %v453, 1.442695
          %v465 = vpow.pop %v464
          %v466 = vmul.f32 %v454, 1.442695
          %v467 = vpow.pop %v466
          %v468 = vmul.f32 %v455, 1.442695
          %v469 = vpow.pop %v468
          %v470 = vmul.f32 %v456, 1.442695
          %v471 = vpow.pop %v470
          %v472 = vmul.f32 %v457, 1.442695
          %v473 = vpow.pop %v472
          %v474 = vadd.f32 %v459, 1.0
          %v475 = vadd.f32 %v461, 1.0
          %v476 = vadd.f32 %v463, 1.0
          %v477 = vadd.f32 %v465, 1.0
          %v478 = vadd.f32 %v467, 1.0
          %v479 = vadd.f32 %v469, 1.0
          %v480 = vadd.f32 %v471, 1.0
          %v481 = vadd.f32 %v473, 1.0
          %v482 = vrcp.pop %v474
          %v483 = vmul.f32 1.0, %v482
          %v484 = vrcp.pop %v475
          %v485 = vmul.f32 1.0, %v484
          %v486 = vrcp.pop %v476
          %v487 = vmul.f32 1.0, %v486
          %v488 = vrcp.pop %v477
          %v489 = vmul.f32 1.0, %v488
          %v490 = vrcp.pop %v478
          %v491 = vmul.f32 1.0, %v490
          %v492 = vrcp.pop %v479
          %v493 = vmul.f32 1.0, %v492
          %v494 = vrcp.pop %v480
          %v495 = vmul.f32 1.0, %v494
          %v496 = vrcp.pop %v481
          %v497 = vmul.f32 1.0, %v496
          %v498 = vmul.f32 %v442, %v483
          %v499 = vmul.f32 %v443, %v485
          %v500 = vmul.f32 %v444, %v487
          %v501 = vmul.f32 %v445, %v489
          %v502 = vmul.f32 %v446, %v491
          %v503 = vmul.f32 %v447, %v493
          %v504 = vmul.f32 %v448, %v495
          %v505 = vmul.f32 %v449, %v497
          %v506 = vpack.c.bf16 %v499, %v498
          %v507 = vpack.c.bf16 %v501, %v500
          %v508 = vpack.c.bf16 %v503, %v502
          %v509 = vpack.c.bf16 %v505, %v504
          %v514 = vunpack.c.l.b16 %v506
          %v515 = vunpack.c.h.b16 %v506
          %v516 = vunpack.c.l.b16 %v507
          %v517 = vunpack.c.h.b16 %v507
          %v518 = vunpack.c.l.b16 %v508
          %v519 = vunpack.c.h.b16 %v508
          %v520 = vunpack.c.l.b16 %v509
          %v521 = vunpack.c.h.b16 %v509
          %v522 = vpack.c.b16 %v514, %v514
          %v523 = vpack.c.b16 %v515, %v515
          %v524 = vpack.c.b16 %v516, %v516
          %v525 = vpack.c.b16 %v517, %v517
          %v526 = vpack.c.b16 %v518, %v518
          %v527 = vpack.c.b16 %v519, %v519
          %v528 = vpack.c.b16 %v520, %v520
          %v529 = vpack.c.b16 %v521, %v521
          %538 = vst [vmem:[%s227] sm:$0xf] %v522
          %539 = vst [vmem:[%s227 + $0x4] sm:$0xf] %v523
          %540 = vst [vmem:[%s227 + $0x8] sm:$0xf] %v524
          %541 = vst [vmem:[%s227 + $0xc] sm:$0xf] %v525
          %542 = vst [vmem:[%s227 + $0x10] sm:$0xf] %v526
          %543 = vst [vmem:[%s227 + $0x14] sm:$0xf] %v527
          %544 = vst [vmem:[%s227 + $0x18] sm:$0xf] %v528
          %545 = vst [vmem:[%s227 + $0x1c] sm:$0xf] %v529
        $region44: #{tpu_custom_call.1} parent=35 // pred_fallthru
          _
        %s546 = sand.u32 %s134, 1
        %s547 = scalar_lea.sflag [#allocation4], %s546
        %s548 = sand.u32 %s134, 1
        %s549 = smul.addr %s548, 32
        %s550 = scalar_lea.vmem [#allocation3], %s549
        // Predicated region
        $region45: #{tpu_custom_call.1} parent=35 // pred_check
          %p551 = pneg %p144
        $region46: #{tpu_custom_call.1} parent=35 // pred_check_branch
          %553 = sbr.rel (%p551) target = $region48
        $region47: #{tpu_custom_call.1} parent=35 // pred_region
          %s554 = smul.u32 8, %s22
          %s556 = ssub.s32 512, 512
          %557 = vsyncadd %s547, %s556
          %s558 = smul.addr %s554, 64
          %s559 = scalar_lea.hbm %s4, %s558
          %s560 = sshll.u32 %s550, 4
          %s561 = int_to_ptr.vmem [resolvable:$true] %s560
          %566 = dma.vmem_to_hbm [thread:$0]  %s561, 512, %s559, %s547, 64, 64, 4
        $region48: #{tpu_custom_call.1} parent=35 // pred_fallthru
          _
      $region36: #{tpu_custom_call.1} parent=5 // pred_fallthru
        _
      %p567 = scmp.le.s32.totalorder 2, %s13
      // Predicated region
      $region49: #{tpu_custom_call.1} parent=5 // pred_check
        %p568 = pneg %p567
      $region50: #{tpu_custom_call.1} parent=5 // pred_check_branch
        %570 = sbr.rel (%p568) target = $region52
      $region51: #{tpu_custom_call.1} parent=5 // pred_region
        %s571 = ssub.s32 %s13, 2
        // Predicated region
        $region53: #{tpu_custom_call.1} parent=51 // pred_check
          %p572 = pneg %p150
        $region54: #{tpu_custom_call.1} parent=51 // pred_check_branch
          %574 = sbr.rel (%p572) target = $region56
        $region55: #{tpu_custom_call.1} parent=51 // pred_region
          %s575 = sand.u32 %s135, 1
          %s576 = scalar_lea.sflag [#allocation4], %s575
          %s577 = sand.u32 %s135, 1
          %s578 = smul.addr %s577, 32
          %s579 = scalar_lea.vmem [#allocation3], %s578
          %580 = dma.done %s576, 512
        $region56: #{tpu_custom_call.1} parent=51 // pred_fallthru
          _
      $region52: #{tpu_custom_call.1} parent=5 // pred_fallthru
        _
    $region6: #{tpu_custom_call.1} parent=1 // loop_footer
      %s17 = sadd.s32 1, %s13
    $region7: #{tpu_custom_call.1} parent=1 // loop_footer_branch
      %12 = sbr.rel target = $region3
    $region8: #{tpu_custom_call.1} parent=1 // loop_exit
      _
    %581 = vsyncpa [#allocation4], 1
    %s582 = scalar_lea.sflag [#allocation4], 1
    %583 = vsyncpa %s582, 1

</llo_original>
